<compile_context>
chip_gen: v6e
topology: v6e:2x2x1
jax: 0.10.0
libtpu: 0.0.40
codegen_flags: <defaults>
</compile_context>

<pallas_src>
import jax
import jax.numpy as jnp
from jax.experimental import pallas as pl
from jax.experimental.pallas import tpu as pltpu

_LANE = 128
_MAX_ROWS = 1024   # rows of 128 lanes per block -> 131072 batch elems, ~2 MiB q block


def _round_up(x, m):
    return ((x + m - 1) // m) * m


def _acrobot_v_kernel(w_ref, q_ref, out_ref):
    # w_ref:   (qdim,)        SMEM scalars  w_j = -g*ls_j*(suffix_ms_j - ms_j/2)
    # q_ref:   (qdim, R, 128) VMEM, joint axis leading, batch dense on (R, 128)
    # out_ref: (R, 128)       VMEM, lane-dense output tile
    qdim = q_ref.shape[0]

    running = q_ref[0]                        # (R, 128) cumsum row 0
    acc = w_ref[0] * jnp.cos(running)
    for j in range(1, qdim):                  # qdim is tiny & static -> unrolled
        running = running + q_ref[j]          # cumsum along the joint axis
        acc = acc + w_ref[j] * jnp.cos(running)

    out_ref[...] = acc


def multilink_acrobot_v(q, params):
    """q: (B, qdim) float, params: (2*qdim+1,) float -> (B, 1) float32."""
    B, qdim = q.shape
    assert params.shape == (2 * qdim + 1,)

    params = params.astype(jnp.float32)
    ms = params[:qdim]
    ls = params[qdim:2 * qdim]
    g = params[2 * qdim]

    # Fold both cumsums' weighting + g + leading minus into one weight vector.
    suffix_ms = jnp.cumsum(ms[::-1])[::-1]            # suffix sums of ms
    w = -g * ls * (suffix_ms - 0.5 * ms)              # (qdim,)

    # Batch on lanes. Pad only to the 128-lane tile (not to the block size);
    # the pad fuses with the transpose copy below.
    # TODO(synk): the (B, qdim) -> (qdim, B) transpose is the one remaining
    # extra HBM pass; drop it if the producer can emit q batch-minor.
    b128 = _round_up(B, _LANE)
    q_t = q.astype(jnp.float32).T                     # (qdim, B)
    if b128 != B:
        q_t = jnp.pad(q_t, ((0, 0), (0, b128 - B)))
    n128 = b128 // _LANE
    q_t = q_t.reshape(qdim, n128, _LANE)              # free reshape

    # Block row count: large blocks for DMA efficiency, multiple of 8 sublanes,
    # and >=~4 blocks when possible so both v7x TensorCores get work.
    if n128 <= 8:
        rows = n128                                   # full extent (small batch)
    else:
        rows = min(_MAX_ROWS, _round_up(-(-n128 // 4), 8))
    grid = (pl.cdiv(n128, rows),)                     # partial last block is OK

    out = pl.pallas_call(
        _acrobot_v_kernel,
        out_shape=jax.ShapeDtypeStruct((n128, _LANE), jnp.float32),
        grid=grid,
        in_specs=[
            pl.BlockSpec(memory_space=pltpu.SMEM),              # w resident in SMEM
            pl.BlockSpec((qdim, rows, _LANE), lambda i: (0, i, 0)),
        ],
        out_specs=pl.BlockSpec((rows, _LANE), lambda i: (i, 0)),
        compiler_params=pltpu.CompilerParams(
            dimension_semantics=("parallel",)),
    )(w, q_t)

    return out.reshape(b128, 1)[:B]                   # (B, 1)


def _reference(q, params):
    qdim = q.shape[1]
    ms = params[:qdim]
    ls = params[qdim:2 * qdim]
    g = params[2 * qdim]
    v_ = ls * jnp.cos(jnp.cumsum(q, axis=1))
    half = v_ / 2.0
    v_ = jnp.cumsum(v_, axis=1) - half
    return -jnp.sum(ms * g * v_, axis=1, keepdims=True)


if __name__ == "__main__":
    qdim = 4
    batch = 8

    key = jax.random.PRNGKey(0)
    kq, kp = jax.random.split(key)

    # Deterministic synthetic parameters (mimics torch.abs(torch.randn(...))).
    params = jnp.abs(jax.random.normal(kp, (2 * qdim + 1,), dtype=jnp.float32))
    q = jax.random.normal(kq, (batch, qdim), dtype=jnp.float32)

    out = jax.block_until_ready(multilink_acrobot_v(q, params))
    ref = _reference(q, params)
    assert out.shape == (batch, 1)
    assert jnp.allclose(out, ref, atol=1e-5, rtol=1e-5), (out, ref)

    # Also exercise the multi-block / partial-last-block tiling path once.
    q_big = jax.random.normal(kq, (2688, qdim), dtype=jnp.float32)
    out_big = jax.block_until_ready(multilink_acrobot_v(q_big, params))
    ref_big = _reference(q_big, params)
    assert out_big.shape == (2688, 1)
    assert jnp.allclose(out_big, ref_big, atol=1e-5, rtol=1e-5)

    print("KERNEL_OK")
</pallas_src>

<mosaic_0001>
module attributes {stable_mosaic.version = 11 : i64} {
  func.func @_acrobot_v_kernel(%arg0: i32, %arg1: memref<4xf32, #tpu.memory_space<smem>>, %arg2: memref<4x1x128xf32, #tpu.memory_space<vmem>>, %arg3: memref<1x128xf32, #tpu.memory_space<vmem>>) attributes {dimension_semantics = [#tpu.dimension_semantics<parallel>], iteration_bounds = array<i64: 1>, scalar_prefetch = 0 : i64, scratch_operands = 0 : i64, tpu.core_type = #tpu.core_type<tc>, window_params = [{transform_indices = @transform_0, window_bounds = array<i64: 4>}, {transform_indices = @transform_1, window_bounds = array<i64: 4, 1, 128>}, {transform_indices = @transform_2, window_bounds = array<i64: 1, 128>}]} {
    %c0 = arith.constant 0 : index
    %c0_0 = arith.constant 0 : index
    %c0_1 = arith.constant 0 : index
    %0 = vector.load %arg2[%c0, %c0_0, %c0_1] : memref<4x1x128xf32, #tpu.memory_space<vmem>>, vector<1x1x128xf32>
    %1 = vector.shape_cast %0 : vector<1x1x128xf32> to vector<1x128xf32>
    %c0_2 = arith.constant 0 : index
    %2 = memref.load %arg1[%c0_2] : memref<4xf32, #tpu.memory_space<smem>>
    %3 = math.cos %1 : vector<1x128xf32>
    %4 = vector.broadcast %2 : f32 to vector<1x128xf32>
    %5 = arith.mulf %4, %3 : vector<1x128xf32>
    %c1 = arith.constant 1 : index
    %c0_3 = arith.constant 0 : index
    %c0_4 = arith.constant 0 : index
    %6 = vector.load %arg2[%c1, %c0_3, %c0_4] : memref<4x1x128xf32, #tpu.memory_space<vmem>>, vector<1x1x128xf32>
    %7 = vector.shape_cast %6 : vector<1x1x128xf32> to vector<1x128xf32>
    %8 = arith.addf %1, %7 : vector<1x128xf32>
    %c1_5 = arith.constant 1 : index
    %9 = memref.load %arg1[%c1_5] : memref<4xf32, #tpu.memory_space<smem>>
    %10 = math.cos %8 : vector<1x128xf32>
    %11 = vector.broadcast %9 : f32 to vector<1x128xf32>
    %12 = arith.mulf %11, %10 : vector<1x128xf32>
    %13 = arith.addf %5, %12 : vector<1x128xf32>
    %c2 = arith.constant 2 : index
    %c0_6 = arith.constant 0 : index
    %c0_7 = arith.constant 0 : index
    %14 = vector.load %arg2[%c2, %c0_6, %c0_7] : memref<4x1x128xf32, #tpu.memory_space<vmem>>, vector<1x1x128xf32>
    %15 = vector.shape_cast %14 : vector<1x1x128xf32> to vector<1x128xf32>
    %16 = arith.addf %8, %15 : vector<1x128xf32>
    %c2_8 = arith.constant 2 : index
    %17 = memref.load %arg1[%c2_8] : memref<4xf32, #tpu.memory_space<smem>>
    %18 = math.cos %16 : vector<1x128xf32>
    %19 = vector.broadcast %17 : f32 to vector<1x128xf32>
    %20 = arith.mulf %19, %18 : vector<1x128xf32>
    %21 = arith.addf %13, %20 : vector<1x128xf32>
    %c3 = arith.constant 3 : index
    %c0_9 = arith.constant 0 : index
    %c0_10 = arith.constant 0 : index
    %22 = vector.load %arg2[%c3, %c0_9, %c0_10] : memref<4x1x128xf32, #tpu.memory_space<vmem>>, vector<1x1x128xf32>
    %23 = vector.shape_cast %22 : vector<1x1x128xf32> to vector<1x128xf32>
    %24 = arith.addf %16, %23 : vector<1x128xf32>
    %c3_11 = arith.constant 3 : index
    %25 = memref.load %arg1[%c3_11] : memref<4xf32, #tpu.memory_space<smem>>
    %26 = math.cos %24 : vector<1x128xf32>
    %27 = vector.broadcast %25 : f32 to vector<1x128xf32>
    %28 = arith.mulf %27, %26 : vector<1x128xf32>
    %29 = arith.addf %21, %28 : vector<1x128xf32>
    %c0_12 = arith.constant 0 : index
    %c0_13 = arith.constant 0 : index
    %30 = vector.load %arg3[%c0_12, %c0_13] : memref<1x128xf32, #tpu.memory_space<vmem>>, vector<1x128xf32>
    tpu.vector_store %arg3[%c0_12, %c0_13], %29 {strides = array<i32>} : memref<1x128xf32, #tpu.memory_space<vmem>>, vector<1x128xf32>,
    return
  }
  func.func @transform_0(%arg0: i32) -> i32 {
    %c0_i32 = arith.constant 0 : i32
    %c0_i32_0 = arith.constant 0 : i32
    return %c0_i32 : i32
  }
  func.func @transform_1(%arg0: i32) -> (i32, i32, i32) {
    %c0_i32 = arith.constant 0 : i32
    %c0_i32_0 = arith.constant 0 : i32
    %c0_i32_1 = arith.constant 0 : i32
    return %c0_i32, %arg0, %c0_i32_0 : i32, i32, i32
  }
  func.func @transform_2(%arg0: i32) -> (i32, i32) {
    %c0_i32 = arith.constant 0 : i32
    %c0_i32_0 = arith.constant 0 : i32
    return %arg0, %c0_i32 : i32, i32
  }
}

</mosaic_0001>

<llo_original>
// kernel: tpu_custom_call.1
$region0: #{tpu_custom_call.1}
  #allocation0 [shape = 'u32[]', space=smem, size = 0x4, offset = 0x4, fixed_abs, tag = 'smem constant byte address 0x4 - core index']
  #allocation1 [shape = 'u32[144,128]{1,0:T(1,128)}', space=vmem, size = 0x12000, scoped, tag = 'internal scratch']
  %s0 = inlined_call_operand.hbm [shape: f32[4], index: 0, kind: input, shape index: {}]
  %s1 = inlined_call_operand.hbm [shape: f32[4,1,128], index: 1, kind: input, shape index: {}]
  %s2 = inlined_call_operand.hbm [shape: f32[1,128], index: 2, kind: output, shape index: {}]
  %s3 = sld [smem:[#allocation0]]
  $region26: #{tpu_custom_call.1} parent=0
    _
  %s5 = ssub.s32 1, %s3
  %s6 = scalar_select 0, %s5, %s3
  $region1: #{tpu_custom_call.1} parent=0
    #allocation2 [shape = 'u8[512]{0}', space=smem, size = 0x200, scoped, tag = 'input window, operand 0, single buffered']
    #allocation3 [shape = 's32[1]{0}', space=sflag, size = 0x4, scoped, tag = 'scoped memory for tpu_custom_call.1']
    #allocation4 [shape = 's32[1]{0}', space=sflag, size = 0x4, scoped, tag = 'scoped memory for tpu_custom_call.1']
    #allocation5 [shape = 's32[1]{0}', space=sflag, size = 0x4, scoped, tag = 'scoped memory for tpu_custom_call.1']
    #allocation6 [shape = 'u8[2048]{0}', space=vmem, size = 0x800, scoped, tag = 'input window, operand 1, single buffered']
    #allocation7 [shape = 'u8[512]{0}', space=vmem, size = 0x400, scoped, tag = 'output window, operand 0, single buffered']
    %7 = vsyncpa [#allocation5], 0
    %8 = vsyncpa [#allocation3], 0
    %9 = vsyncpa [#allocation4], 0
    // Predicated region
    $region2: #{tpu_custom_call.1} parent=1 // pred_check
      _
    $region3: #{tpu_custom_call.1} parent=1 // pred_check_branch
      %11 = sbr.rel (0) target = $region5
    $region4: #{tpu_custom_call.1} parent=1 // pred_region
      %s13 = ssub.s32 16, 16
      %14 = vsyncadd [#allocation5], %s13
      %17 = dma.hbm_to_smem %s0, 16, [#allocation2], [#allocation5]
    $region5: #{tpu_custom_call.1} parent=1 // pred_fallthru
      _
    // Predicated region
    $region6: #{tpu_custom_call.1} parent=1 // pred_check
      _
    $region7: #{tpu_custom_call.1} parent=1 // pred_check_branch
      %19 = sbr.rel (0) target = $region9
    $region8: #{tpu_custom_call.1} parent=1 // pred_region
      %s21 = ssub.s32 64, 64
      %22 = vsyncadd [#allocation3], %s21
      %s23 = sshll.u32 [#allocation6], 4
      %s24 = int_to_ptr.vmem [resolvable:$true] %s23
      %29 = dma.hbm_to_vmem [thread:$0]  %s1, 64, %s24, [#allocation3], 16, 16, 1
    $region9: #{tpu_custom_call.1} parent=1 // pred_fallthru
      _
    // Predicated region
    $region10: #{tpu_custom_call.1} parent=1 // pred_check
      _
    $region11: #{tpu_custom_call.1} parent=1 // pred_check_branch
      %31 = sbr.rel (0) target = $region13
    $region12: #{tpu_custom_call.1} parent=1 // pred_region
      %32 = dma.done [#allocation5], 16
    $region13: #{tpu_custom_call.1} parent=1 // pred_fallthru
      _
    // Predicated region
    $region14: #{tpu_custom_call.1} parent=1 // pred_check
      _
    $region15: #{tpu_custom_call.1} parent=1 // pred_check_branch
      %34 = sbr.rel (0) target = $region17
    $region16: #{tpu_custom_call.1} parent=1 // pred_region
      %35 = dma.done [#allocation3], 64
    $region17: #{tpu_custom_call.1} parent=1 // pred_fallthru
      _
    %36 = sfence
    %v37 = vld [vmem:[#allocation6] sm:$0x1]
    %s38 = sld [smem:[#allocation2]]
    %v39 = vand.u32 2147483647, %v37
    %vm40 = vcmp.le.f32.partialorder %v39, 0.7853982
    %vm41 = vcmp.lt.s32.totalorder %v37, 0
    %v42 = vand.u32 %v37, 2139095040
    %v43 = vshrl.u32 %v42, 23
    %v44 = vsub.s32 %v43, 127
    %v45 = vand.u32 2147483647, %v37
    %v46 = vand.u32 %v45, 8388607
    %v47 = vor.u32 %v46, 8388608
    %v48 = vsub.s32 0, %v47
    %v49 = vadd.s32 %v44, 1
    %vm50 = vcmp.gt.s32.totalorder %v49, 0
    %v51 = vsel %vm50, %v49, 0
    %v52 = vshrl.u32 %v51, 5
    %v53 = vand.u32 %v51, 31
    %v54 = vsub.s32 32, %v53
    %v55 = vshrl.u32 683565275, %v54
    %v56 = vshll.u32 683565275, %v53
    %v57 = vshrl.u32 2475754826, %v54
    %v58 = vor.u32 %v56, %v57
    %v59 = vshll.u32 2475754826, %v53
    %v60 = vshrl.u32 2131351028, %v54
    %v61 = vor.u32 %v59, %v60
    %v62 = vshll.u32 2131351028, %v53
    %v63 = vshrl.u32 2102212464, %v54
    %v64 = vor.u32 %v62, %v63
    %v65 = vshll.u32 2102212464, %v53
    %v66 = vshrl.u32 920167782, %v54
    %v67 = vor.u32 %v65, %v66
    %v68 = vshll.u32 920167782, %v53
    %v69 = vshrl.u32 1326507024, %v54
    %v70 = vor.u32 %v68, %v69
    %vm71 = vcmp.lt.s32.totalorder %v52, 1
    %vm72 = vcmp.lt.s32.totalorder %v52, 2
    %vm73 = vcmp.lt.s32.totalorder %v52, 3
    %vm74 = vcmp.lt.s32.totalorder %v52, 4
    %v75 = vsel %vm71, %v55, %v58
    %v76 = vsel %vm74, %v64, 2102212464
    %v77 = vsel %vm73, %v61, %v76
    %v78 = vsel %vm72, %v75, %v77
    %v79 = vsel %vm71, %v58, %v61
    %v80 = vsel %vm74, %v67, 920167782
    %v81 = vsel %vm73, %v64, %v80
    %v82 = vsel %vm72, %v79, %v81
    %v83 = vsel %vm71, %v61, %v64
    %v84 = vsel %vm74, %v70, 1326507024
    %v85 = vsel %vm73, %v67, %v84
    %v86 = vsel %vm72, %v83, %v85
    %v87 = vshll.u32 %v47, 8
    %v88 = vmul.u32.u64.compose %v87, %v86
    %v89 = vextract.low.u32 %v88
    %v90 = vextract.high.u32 %v88
    %v91 = vmul.u32.u64.compose %v87, %v82
    %v92 = vextract.low.u32 %v91
    %v93 = vextract.high.u32 %v91
    %v94 = vmul.u32 %v87, %v78
    %v95 = vadd.s32 %v90, %v92
    %vm96 = vc.u32 %v90, %v92
    %v97 = vadd.s32 %v93, 1
    %v98 = vsel %vm96, %v97, %v93
    %v99 = vadd.s32 %v94, %v98
    %v100 = vadd.s32 %v99, 536870912
    %v101 = vshrl.u32 %v100, 30
    %v102 = vshll.u32 %v101, 30
    %v103 = vsub.s32 %v99, %v102
    %vm104 = vcmp.lt.s32.totalorder %v103, 0
    %v105 = vsub.s32 0, %v103
    %v106 = vsel %vm104, %v105, %v103
    %v107 = vclz %v106
    %v108 = vsub.s32 %v107, 2
    %vm109 = vcmp.gt.s32.totalorder 0, %v108
    %v110 = vsel %vm109, 0, %v108
    %v111 = vsub.s32 32, %v110
    %v112 = vshll.u32 %v103, %v110
    %v113 = vshrl.u32 %v95, %v111
    %v114 = vor.u32 %v112, %v113
    %v115 = vsub.s32 4294967266, %v110
    %v116 = vadd.s32 %v115, 127
    %v117 = vshll.u32 %v116, 23
    %v118 = vor.u32 4788187, %v117
    %v119 = vand.u32 2147483647, %v118
    %v121 = vcvt.s32.f32 %v114
    %v122 = vmul.f32 %v121, %v119
    %v123 = vxor.u32 %v122, 2147483648
    %v124 = vsel %vm41, %v123, %v122
    %v125 = vsub.s32 4, %v101
    %v126 = vsel %vm41, %v125, %v101
    %v127 = vsel %vm40, %v37, %v124
    %v128 = vsel %vm40, 0, %v126
    %v129 = vcosq.f32.pop %v127
    %v130 = vsinq.f32.pop %v127
    %vm131 = vweird.f32 %v37
    %v132 = vand.u32 %v128, 3
    %vm133 = vcmp.lt.s32.totalorder %v132, 2
    %vm134 = vcmp.eq.s32.totalorder %v132, 0
    %v135 = vxor.u32 %v130, 2147483648
    %v136 = vsel %vm134, %v129, %v135
    %vm137 = vcmp.eq.s32.totalorder %v132, 2
    %v138 = vxor.u32 %v129, 2147483648
    %v139 = vsel %vm137, %v138, %v130
    %v140 = vsel %vm133, %v136, %v139
    %v141 = vsel %vm131, nan, %v140
    %v142 = vstv %s38
    %v143 = vmul.f32 %v142, %v141
    %s144 = scalar_lea.vmem [#allocation6], 1
    %v145 = vld [vmem:[%s144] sm:$0x1]
    %v146 = vadd.f32 %v37, %v145
    %s147 = sld [smem:[#allocation2 + $0x1]]
    %v148 = vand.u32 2147483647, %v146
    %vm149 = vcmp.le.f32.partialorder %v148, 0.7853982
    %vm150 = vcmp.lt.s32.totalorder %v146, 0
    %v151 = vand.u32 %v146, 2139095040
    %v152 = vshrl.u32 %v151, 23
    %v153 = vsub.s32 %v152, 127
    %v154 = vand.u32 2147483647, %v146
    %v155 = vand.u32 %v154, 8388607
    %v156 = vor.u32 %v155, 8388608
    %v157 = vsub.s32 0, %v156
    %v158 = vadd.s32 %v153, 1
    %vm159 = vcmp.gt.s32.totalorder %v158, 0
    %v160 = vsel %vm159, %v158, 0
    %v161 = vshrl.u32 %v160, 5
    %v162 = vand.u32 %v160, 31
    %v163 = vsub.s32 32, %v162
    %v164 = vshrl.u32 683565275, %v163
    %v165 = vshll.u32 683565275, %v162
    %v166 = vshrl.u32 2475754826, %v163
    %v167 = vor.u32 %v165, %v166
    %v168 = vshll.u32 2475754826, %v162
    %v169 = vshrl.u32 2131351028, %v163
    %v170 = vor.u32 %v168, %v169
    %v171 = vshll.u32 2131351028, %v162
    %v172 = vshrl.u32 2102212464, %v163
    %v173 = vor.u32 %v171, %v172
    %v174 = vshll.u32 2102212464, %v162
    %v175 = vshrl.u32 920167782, %v163
    %v176 = vor.u32 %v174, %v175
    %v177 = vshll.u32 920167782, %v162
    %v178 = vshrl.u32 1326507024, %v163
    %v179 = vor.u32 %v177, %v178
    %vm180 = vcmp.lt.s32.totalorder %v161, 1
    %vm181 = vcmp.lt.s32.totalorder %v161, 2
    %vm182 = vcmp.lt.s32.totalorder %v161, 3
    %vm183 = vcmp.lt.s32.totalorder %v161, 4
    %v184 = vsel %vm180, %v164, %v167
    %v185 = vsel %vm183, %v173, 2102212464
    %v186 = vsel %vm182, %v170, %v185
    %v187 = vsel %vm181, %v184, %v186
    %v188 = vsel %vm180, %v167, %v170
    %v189 = vsel %vm183, %v176, 920167782
    %v190 = vsel %vm182, %v173, %v189
    %v191 = vsel %vm181, %v188, %v190
    %v192 = vsel %vm180, %v170, %v173
    %v193 = vsel %vm183, %v179, 1326507024
    %v194 = vsel %vm182, %v176, %v193
    %v195 = vsel %vm181, %v192, %v194
    %v196 = vshll.u32 %v156, 8
    %v197 = vmul.u32.u64.compose %v196, %v195
    %v198 = vextract.low.u32 %v197
    %v199 = vextract.high.u32 %v197
    %v200 = vmul.u32.u64.compose %v196, %v191
    %v201 = vextract.low.u32 %v200
    %v202 = vextract.high.u32 %v200
    %v203 = vmul.u32 %v196, %v187
    %v204 = vadd.s32 %v199, %v201
    %vm205 = vc.u32 %v199, %v201
    %v206 = vadd.s32 %v202, 1
    %v207 = vsel %vm205, %v206, %v202
    %v208 = vadd.s32 %v203, %v207
    %v209 = vadd.s32 %v208, 536870912
    %v210 = vshrl.u32 %v209, 30
    %v211 = vshll.u32 %v210, 30
    %v212 = vsub.s32 %v208, %v211
    %vm213 = vcmp.lt.s32.totalorder %v212, 0
    %v214 = vsub.s32 0, %v212
    %v215 = vsel %vm213, %v214, %v212
    %v216 = vclz %v215
    %v217 = vsub.s32 %v216, 2
    %vm218 = vcmp.gt.s32.totalorder 0, %v217
    %v219 = vsel %vm218, 0, %v217
    %v220 = vsub.s32 32, %v219
    %v221 = vshll.u32 %v212, %v219
    %v222 = vshrl.u32 %v204, %v220
    %v223 = vor.u32 %v221, %v222
    %v224 = vsub.s32 4294967266, %v219
    %v225 = vadd.s32 %v224, 127
    %v226 = vshll.u32 %v225, 23
    %v227 = vor.u32 4788187, %v226
    %v228 = vand.u32 2147483647, %v227
    %v230 = vcvt.s32.f32 %v223
    %v231 = vmul.f32 %v230, %v228
    %v232 = vxor.u32 %v231, 2147483648
    %v233 = vsel %vm150, %v232, %v231
    %v234 = vsub.s32 4, %v210
    %v235 = vsel %vm150, %v234, %v210
    %v236 = vsel %vm149, %v146, %v233
    %v237 = vsel %vm149, 0, %v235
    %v238 = vcosq.f32.pop %v236
    %v239 = vsinq.f32.pop %v236
    %vm240 = vweird.f32 %v146
    %v241 = vand.u32 %v237, 3
    %vm242 = vcmp.lt.s32.totalorder %v241, 2
    %vm243 = vcmp.eq.s32.totalorder %v241, 0
    %v244 = vxor.u32 %v239, 2147483648
    %v245 = vsel %vm243, %v238, %v244
    %vm246 = vcmp.eq.s32.totalorder %v241, 2
    %v247 = vxor.u32 %v238, 2147483648
    %v248 = vsel %vm246, %v247, %v239
    %v249 = vsel %vm242, %v245, %v248
    %v250 = vsel %vm240, nan, %v249
    %v251 = vstv %s147
    %v252 = vmul.f32 %v251, %v250
    %v253 = vadd.f32 %v143, %v252
    %s254 = scalar_lea.vmem [#allocation6], 2
    %v255 = vld [vmem:[%s254] sm:$0x1]
    %v256 = vadd.f32 %v146, %v255
    %s257 = sld [smem:[#allocation2 + $0x2]]
    %v258 = vand.u32 2147483647, %v256
    %vm259 = vcmp.le.f32.partialorder %v258, 0.7853982
    %vm260 = vcmp.lt.s32.totalorder %v256, 0
    %v261 = vand.u32 %v256, 2139095040
    %v262 = vshrl.u32 %v261, 23
    %v263 = vsub.s32 %v262, 127
    %v264 = vand.u32 2147483647, %v256
    %v265 = vand.u32 %v264, 8388607
    %v266 = vor.u32 %v265, 8388608
    %v267 = vsub.s32 0, %v266
    %v268 = vadd.s32 %v263, 1
    %vm269 = vcmp.gt.s32.totalorder %v268, 0
    %v270 = vsel %vm269, %v268, 0
    %v271 = vshrl.u32 %v270, 5
    %v272 = vand.u32 %v270, 31
    %v273 = vsub.s32 32, %v272
    %v274 = vshrl.u32 683565275, %v273
    %v275 = vshll.u32 683565275, %v272
    %v276 = vshrl.u32 2475754826, %v273
    %v277 = vor.u32 %v275, %v276
    %v278 = vshll.u32 2475754826, %v272
    %v279 = vshrl.u32 2131351028, %v273
    %v280 = vor.u32 %v278, %v279
    %v281 = vshll.u32 2131351028, %v272
    %v282 = vshrl.u32 2102212464, %v273
    %v283 = vor.u32 %v281, %v282
    %v284 = vshll.u32 2102212464, %v272
    %v285 = vshrl.u32 920167782, %v273
    %v286 = vor.u32 %v284, %v285
    %v287 = vshll.u32 920167782, %v272
    %v288 = vshrl.u32 1326507024, %v273
    %v289 = vor.u32 %v287, %v288
    %vm290 = vcmp.lt.s32.totalorder %v271, 1
    %vm291 = vcmp.lt.s32.totalorder %v271, 2
    %vm292 = vcmp.lt.s32.totalorder %v271, 3
    %vm293 = vcmp.lt.s32.totalorder %v271, 4
    %v294 = vsel %vm290, %v274, %v277
    %v295 = vsel %vm293, %v283, 2102212464
    %v296 = vsel %vm292, %v280, %v295
    %v297 = vsel %vm291, %v294, %v296
    %v298 = vsel %vm290, %v277, %v280
    %v299 = vsel %vm293, %v286, 920167782
    %v300 = vsel %vm292, %v283, %v299
    %v301 = vsel %vm291, %v298, %v300
    %v302 = vsel %vm290, %v280, %v283
    %v303 = vsel %vm293, %v289, 1326507024
    %v304 = vsel %vm292, %v286, %v303
    %v305 = vsel %vm291, %v302, %v304
    %v306 = vshll.u32 %v266, 8
    %v307 = vmul.u32.u64.compose %v306, %v305
    %v308 = vextract.low.u32 %v307
    %v309 = vextract.high.u32 %v307
    %v310 = vmul.u32.u64.compose %v306, %v301
    %v311 = vextract.low.u32 %v310
    %v312 = vextract.high.u32 %v310
    %v313 = vmul.u32 %v306, %v297
    %v314 = vadd.s32 %v309, %v311
    %vm315 = vc.u32 %v309, %v311
    %v316 = vadd.s32 %v312, 1
    %v317 = vsel %vm315, %v316, %v312
    %v318 = vadd.s32 %v313, %v317
    %v319 = vadd.s32 %v318, 536870912
    %v320 = vshrl.u32 %v319, 30
    %v321 = vshll.u32 %v320, 30
    %v322 = vsub.s32 %v318, %v321
    %vm323 = vcmp.lt.s32.totalorder %v322, 0
    %v324 = vsub.s32 0, %v322
    %v325 = vsel %vm323, %v324, %v322
    %v326 = vclz %v325
    %v327 = vsub.s32 %v326, 2
    %vm328 = vcmp.gt.s32.totalorder 0, %v327
    %v329 = vsel %vm328, 0, %v327
    %v330 = vsub.s32 32, %v329
    %v331 = vshll.u32 %v322, %v329
    %v332 = vshrl.u32 %v314, %v330
    %v333 = vor.u32 %v331, %v332
    %v334 = vsub.s32 4294967266, %v329
    %v335 = vadd.s32 %v334, 127
    %v336 = vshll.u32 %v335, 23
    %v337 = vor.u32 4788187, %v336
    %v338 = vand.u32 2147483647, %v337
    %v340 = vcvt.s32.f32 %v333
    %v341 = vmul.f32 %v340, %v338
    %v342 = vxor.u32 %v341, 2147483648
    %v343 = vsel %vm260, %v342, %v341
    %v344 = vsub.s32 4, %v320
    %v345 = vsel %vm260, %v344, %v320
    %v346 = vsel %vm259, %v256, %v343
    %v347 = vsel %vm259, 0, %v345
    %v348 = vcosq.f32.pop %v346
    %v349 = vsinq.f32.pop %v346
    %vm350 = vweird.f32 %v256
    %v351 = vand.u32 %v347, 3
    %vm352 = vcmp.lt.s32.totalorder %v351, 2
    %vm353 = vcmp.eq.s32.totalorder %v351, 0
    %v354 = vxor.u32 %v349, 2147483648
    %v355 = vsel %vm353, %v348, %v354
    %vm356 = vcmp.eq.s32.totalorder %v351, 2
    %v357 = vxor.u32 %v348, 2147483648
    %v358 = vsel %vm356, %v357, %v349
    %v359 = vsel %vm352, %v355, %v358
    %v360 = vsel %vm350, nan, %v359
    %v361 = vstv %s257
    %v362 = vmul.f32 %v361, %v360
    %v363 = vadd.f32 %v253, %v362
    %s364 = scalar_lea.vmem [#allocation6], 3
    %v365 = vld [vmem:[%s364] sm:$0x1]
    %v366 = vadd.f32 %v256, %v365
    %s367 = sld [smem:[#allocation2 + $0x3]]
    %v368 = vand.u32 2147483647, %v366
    %vm369 = vcmp.le.f32.partialorder %v368, 0.7853982
    %vm370 = vcmp.lt.s32.totalorder %v366, 0
    %v371 = vand.u32 %v366, 2139095040
    %v372 = vshrl.u32 %v371, 23
    %v373 = vsub.s32 %v372, 127
    %v374 = vand.u32 2147483647, %v366
    %v375 = vand.u32 %v374, 8388607
    %v376 = vor.u32 %v375, 8388608
    %v377 = vsub.s32 0, %v376
    %v378 = vadd.s32 %v373, 1
    %vm379 = vcmp.gt.s32.totalorder %v378, 0
    %v380 = vsel %vm379, %v378, 0
    %v381 = vshrl.u32 %v380, 5
    %v382 = vand.u32 %v380, 31
    %v383 = vsub.s32 32, %v382
    %v384 = vshrl.u32 683565275, %v383
    %v385 = vshll.u32 683565275, %v382
    %v386 = vshrl.u32 2475754826, %v383
    %v387 = vor.u32 %v385, %v386
    %v388 = vshll.u32 2475754826, %v382
    %v389 = vshrl.u32 2131351028, %v383
    %v390 = vor.u32 %v388, %v389
    %v391 = vshll.u32 2131351028, %v382
    %v392 = vshrl.u32 2102212464, %v383
    %v393 = vor.u32 %v391, %v392
    %v394 = vshll.u32 2102212464, %v382
    %v395 = vshrl.u32 920167782, %v383
    %v396 = vor.u32 %v394, %v395
    %v397 = vshll.u32 920167782, %v382
    %v398 = vshrl.u32 1326507024, %v383
    %v399 = vor.u32 %v397, %v398
    %vm400 = vcmp.lt.s32.totalorder %v381, 1
    %vm401 = vcmp.lt.s32.totalorder %v381, 2
    %vm402 = vcmp.lt.s32.totalorder %v381, 3
    %vm403 = vcmp.lt.s32.totalorder %v381, 4
    %v404 = vsel %vm400, %v384, %v387
    %v405 = vsel %vm403, %v393, 2102212464
    %v406 = vsel %vm402, %v390, %v405
    %v407 = vsel %vm401, %v404, %v406
    %v408 = vsel %vm400, %v387, %v390
    %v409 = vsel %vm403, %v396, 920167782
    %v410 = vsel %vm402, %v393, %v409
    %v411 = vsel %vm401, %v408, %v410
    %v412 = vsel %vm400, %v390, %v393
    %v413 = vsel %vm403, %v399, 1326507024
    %v414 = vsel %vm402, %v396, %v413
    %v415 = vsel %vm401, %v412, %v414
    %v416 = vshll.u32 %v376, 8
    %v417 = vmul.u32.u64.compose %v416, %v415
    %v418 = vextract.low.u32 %v417
    %v419 = vextract.high.u32 %v417
    %v420 = vmul.u32.u64.compose %v416, %v411
    %v421 = vextract.low.u32 %v420
    %v422 = vextract.high.u32 %v420
    %v423 = vmul.u32 %v416, %v407
    %v424 = vadd.s32 %v419, %v421
    %vm425 = vc.u32 %v419, %v421
    %v426 = vadd.s32 %v422, 1
    %v427 = vsel %vm425, %v426, %v422
    %v428 = vadd.s32 %v423, %v427
    %v429 = vadd.s32 %v428, 536870912
    %v430 = vshrl.u32 %v429, 30
    %v431 = vshll.u32 %v430, 30
    %v432 = vsub.s32 %v428, %v431
    %vm433 = vcmp.lt.s32.totalorder %v432, 0
    %v434 = vsub.s32 0, %v432
    %v435 = vsel %vm433, %v434, %v432
    %v436 = vclz %v435
    %v437 = vsub.s32 %v436, 2
    %vm438 = vcmp.gt.s32.totalorder 0, %v437
    %v439 = vsel %vm438, 0, %v437
    %v440 = vsub.s32 32, %v439
    %v441 = vshll.u32 %v432, %v439
    %v442 = vshrl.u32 %v424, %v440
    %v443 = vor.u32 %v441, %v442
    %v444 = vsub.s32 4294967266, %v439
    %v445 = vadd.s32 %v444, 127
    %v446 = vshll.u32 %v445, 23
    %v447 = vor.u32 4788187, %v446
    %v448 = vand.u32 2147483647, %v447
    %v450 = vcvt.s32.f32 %v443
    %v451 = vmul.f32 %v450, %v448
    %v452 = vxor.u32 %v451, 2147483648
    %v453 = vsel %vm370, %v452, %v451
    %v454 = vsub.s32 4, %v430
    %v455 = vsel %vm370, %v454, %v430
    %v456 = vsel %vm369, %v366, %v453
    %v457 = vsel %vm369, 0, %v455
    %v458 = vcosq.f32.pop %v456
    %v459 = vsinq.f32.pop %v456
    %vm460 = vweird.f32 %v366
    %v461 = vand.u32 %v457, 3
    %vm462 = vcmp.lt.s32.totalorder %v461, 2
    %vm463 = vcmp.eq.s32.totalorder %v461, 0
    %v464 = vxor.u32 %v459, 2147483648
    %v465 = vsel %vm463, %v458, %v464
    %vm466 = vcmp.eq.s32.totalorder %v461, 2
    %v467 = vxor.u32 %v458, 2147483648
    %v468 = vsel %vm466, %v467, %v459
    %v469 = vsel %vm462, %v465, %v468
    %v470 = vsel %vm460, nan, %v469
    %v471 = vstv %s367
    %v472 = vmul.f32 %v471, %v470
    %v473 = vadd.f32 %v363, %v472
    %474 = vst [vmem:[#allocation7] sm:$0x1] %v473
    // Predicated region
    $region18: #{tpu_custom_call.1} parent=1 // pred_check
      _
    $region19: #{tpu_custom_call.1} parent=1 // pred_check_branch
      %476 = sbr.rel (0) target = $region21
    $region20: #{tpu_custom_call.1} parent=1 // pred_region
      %s478 = ssub.s32 16, 16
      %479 = vsyncadd [#allocation4], %s478
      %s481 = sshll.u32 [#allocation7], 4
      %s482 = int_to_ptr.vmem [resolvable:$true] %s481
      %484 = dma.vmem_to_hbm [thread:$0]  %s482, 16, %s2, [#allocation4]
    $region21: #{tpu_custom_call.1} parent=1 // pred_fallthru
      _
    // Predicated region
    $region22: #{tpu_custom_call.1} parent=1 // pred_check
      _
    $region23: #{tpu_custom_call.1} parent=1 // pred_check_branch
      %486 = sbr.rel (0) target = $region25
    $region24: #{tpu_custom_call.1} parent=1 // pred_region
      %487 = dma.done [#allocation4], 16
    $region25: #{tpu_custom_call.1} parent=1 // pred_fallthru
      _
    %488 = vsyncpa [#allocation3], 1
    %489 = vsyncpa [#allocation4], 1
    %490 = vsyncpa [#allocation5], 1

</llo_original>
